<compile_context>
chip_gen: v7x
topology: tpu7x:2x2x1
jax: 0.10.0
libtpu: 0.0.40
codegen_flags: <defaults>
</compile_context>

<pallas_src>
import jax
import jax.numpy as jnp
from jax.experimental import pallas as pl
from jax.experimental.pallas import tpu as pltpu

C_IN = 1
C_OUT = 10

# Per-grid-step lane budget (NB * T).  65536 lanes -> ~12 MiB of double-buffered
# f32 tiles (8-sublane-padded input + 16-sublane-padded 10-channel output).
_TARGET_LANES_PER_STEP = 65536
_VMEM_LIMIT_BYTES = 32 * 1024 * 1024


def _round_up(x: int, m: int) -> int:
    return (x + m - 1) // m * m


def _pick_tiling(n: int, hw_pad: int):
    """Pick (NB, T): spatial tile T (multiple of 128) and batch block NB."""
    # Spatial tile: as large as the image allows, capped by the lane budget.
    t = min(hw_pad, _TARGET_LANES_PER_STEP)          # multiple of 128 (hw_pad is)
    # Batch block: fill the remaining lane budget with whole images.
    nb = max(1, min(n, _TARGET_LANES_PER_STEP // t))
    # v7x has 2 TensorCores: make sure a "parallel" axis has >= 2 steps to shard.
    if pl.cdiv(n, nb) * pl.cdiv(hw_pad, t) == 1:
        if nb >= 2:
            nb = pl.cdiv(nb, 2)
        elif t >= 256:
            t = (t // 2) // 128 * 128
    return nb, t


def _conv1x1_kernel(x_ref, w_ref, b_ref, o_ref):
    # x_ref: (NB, 1, T)   w_ref/b_ref: (C_OUT, 1)   o_ref: (NB, C_OUT, T)
    # VPU broadcast-FMA: (1,C_OUT,1) * (NB,1,T) + (1,C_OUT,1) -> (NB,C_OUT,T).
    w = w_ref[...][None, :, :]
    b = b_ref[...][None, :, :]
    o_ref[...] = w * x_ref[...] + b


def conv1x1_pallas(x3d, w_col, b_col):
    """x3d: (N, 1, HW) f32; w_col/b_col: (C_OUT, 1) f32 -> (N, C_OUT, HW) f32."""
    N, _, HW = x3d.shape
    HW_pad = _round_up(HW, 128)
    if HW_pad != HW:
        x3d = jnp.pad(x3d, ((0, 0), (0, 0), (0, HW_pad - HW)))

    NB, T = _pick_tiling(N, HW_pad)
    grid = (pl.cdiv(N, NB), pl.cdiv(HW_pad, T))

    out = pl.pallas_call(
        _conv1x1_kernel,
        out_shape=jax.ShapeDtypeStruct((N, C_OUT, HW_pad), jnp.float32),
        grid=grid,
        in_specs=[
            pl.BlockSpec((NB, 1, T), lambda n, t: (n, 0, t)),
            pl.BlockSpec((C_OUT, 1), lambda n, t: (0, 0)),
            pl.BlockSpec((C_OUT, 1), lambda n, t: (0, 0)),
        ],
        out_specs=pl.BlockSpec((NB, C_OUT, T), lambda n, t: (n, 0, t)),
        compiler_params=pltpu.CompilerParams(
            dimension_semantics=("parallel", "parallel"),
            vmem_limit_bytes=_VMEM_LIMIT_BYTES),
        cost_estimate=pl.CostEstimate(
            flops=2 * N * C_OUT * HW_pad,
            transcendentals=0,
            bytes_accessed=4 * N * HW_pad * (1 + C_OUT)),
    )(x3d, w_col, b_col)

    if HW_pad != HW:
        out = out[:, :, :HW]
    return out


def init_params(key):
    """Deterministic BayesConv2d(1, 10, 1) parameters: (w_mu, w_rho, b_mu, b_rho)."""
    k1, k2 = jax.random.split(key)
    w_mu = 0.1 * jax.random.normal(k1, (C_OUT, C_IN, 1, 1), jnp.float32)
    w_rho = jnp.full((C_OUT, C_IN, 1, 1), -3.0, jnp.float32)
    b_mu = 0.1 * jax.random.normal(k2, (C_OUT,), jnp.float32)
    b_rho = jnp.full((C_OUT,), -3.0, jnp.float32)
    return w_mu, w_rho, b_mu, b_rho


def dummy_model_conv_forward(x_nchw, params, sample_key):
    """Forward pass of DummyModelConv. x_nchw: [N, 1, H, W] -> [N, 10, H, W]."""
    w_mu, w_rho, b_mu, b_rho = params
    kw, kb = jax.random.split(sample_key)
    # Bayesian reparameterization (stochastic weight sample): O(10) elements.
    w = w_mu + jax.nn.softplus(w_rho) * jax.random.normal(kw, w_mu.shape, w_mu.dtype)
    b = b_mu + jax.nn.softplus(b_rho) * jax.random.normal(kb, b_mu.shape, b_mu.dtype)

    N, C, H, W = x_nchw.shape
    assert C == C_IN == 1
    HW = H * W
    # C_in == 1  =>  NCHW -> (N, 1, H*W) is a pure (free) reshape, no transpose.
    x3d = x_nchw.reshape(N, 1, HW).astype(jnp.float32)
    w_col = w.reshape(C_OUT, 1)   # (10, 1) column for sublane-wise broadcast
    b_col = b.reshape(C_OUT, 1)

    out3d = conv1x1_pallas(x3d, w_col, b_col)     # (N, C_OUT, HW), lane-dense
    return out3d.reshape(N, C_OUT, H, W)          # free reshape back to NCHW


if __name__ == "__main__":
    root = jax.random.PRNGKey(0)
    k_param, k_x, k_sample = jax.random.split(root, 3)

    params = init_params(k_param)
    x = jax.random.normal(k_x, (2, C_IN, 16, 16), jnp.float32)  # NCHW, in_channels=1

    out = dummy_model_conv_forward(x, params, k_sample)
    out = jax.block_until_ready(out)

    assert out.shape == (2, C_OUT, 16, 16), out.shape
    assert out.dtype == jnp.float32

    # Sanity check against a pure-JAX reference of the same sampled conv.
    w_mu, w_rho, b_mu, b_rho = params
    kw, kb = jax.random.split(k_sample)
    w = w_mu + jax.nn.softplus(w_rho) * jax.random.normal(kw, w_mu.shape, w_mu.dtype)
    b = b_mu + jax.nn.softplus(b_rho) * jax.random.normal(kb, b_mu.shape, b_mu.dtype)
    ref = jnp.einsum("nchw,oc->nohw", x, w.reshape(C_OUT, C_IN)) + b[None, :, None, None]
    assert jnp.allclose(out, ref, atol=1e-5, rtol=1e-5)

    print("KERNEL_OK")
</pallas_src>

<mosaic_0001>
module attributes {stable_mosaic.version = 11 : i64} {
  func.func @_conv1x1_kernel(%arg0: i32, %arg1: i32, %arg2: memref<1x1x256xf32, #tpu.memory_space<vmem>>, %arg3: memref<10x1xf32, #tpu.memory_space<vmem>>, %arg4: memref<10x1xf32, #tpu.memory_space<vmem>>, %arg5: memref<1x10x256xf32, #tpu.memory_space<vmem>>) attributes {dimension_semantics = [#tpu.dimension_semantics<parallel>, #tpu.dimension_semantics<parallel>], iteration_bounds = array<i64: 2, 1>, scalar_prefetch = 0 : i64, scratch_operands = 0 : i64, tpu.core_type = #tpu.core_type<tc>, window_params = [{transform_indices = @transform_0, window_bounds = array<i64: 1, 1, 256>}, {pipeline_mode = #tpu.pipeline_mode<synchronous>, transform_indices = @transform_1, window_bounds = array<i64: 10, 1>}, {pipeline_mode = #tpu.pipeline_mode<synchronous>, transform_indices = @transform_2, window_bounds = array<i64: 10, 1>}, {transform_indices = @transform_3, window_bounds = array<i64: 1, 10, 256>}]} {
    %c0 = arith.constant 0 : index
    %c0_0 = arith.constant 0 : index
    %0 = vector.load %arg3[%c0, %c0_0] : memref<10x1xf32, #tpu.memory_space<vmem>>, vector<10x1xf32>
    %1 = vector.shape_cast %0 : vector<10x1xf32> to vector<1x10x1xf32>
    %c0_1 = arith.constant 0 : index
    %c0_2 = arith.constant 0 : index
    %2 = vector.load %arg4[%c0_1, %c0_2] : memref<10x1xf32, #tpu.memory_space<vmem>>, vector<10x1xf32>
    %3 = vector.shape_cast %2 : vector<10x1xf32> to vector<1x10x1xf32>
    %c0_3 = arith.constant 0 : index
    %c0_4 = arith.constant 0 : index
    %c0_5 = arith.constant 0 : index
    %4 = vector.load %arg2[%c0_3, %c0_4, %c0_5] : memref<1x1x256xf32, #tpu.memory_space<vmem>>, vector<1x1x256xf32>
    %5 = vector.broadcast %1 : vector<1x10x1xf32> to vector<1x10x256xf32>
    %6 = vector.broadcast %4 : vector<1x1x256xf32> to vector<1x10x256xf32>
    %7 = arith.mulf %5, %6 : vector<1x10x256xf32>
    %8 = vector.broadcast %3 : vector<1x10x1xf32> to vector<1x10x256xf32>
    %9 = arith.addf %7, %8 : vector<1x10x256xf32>
    %c0_6 = arith.constant 0 : index
    %c0_7 = arith.constant 0 : index
    %c0_8 = arith.constant 0 : index
    %10 = vector.load %arg5[%c0_6, %c0_7, %c0_8] : memref<1x10x256xf32, #tpu.memory_space<vmem>>, vector<1x10x256xf32>
    tpu.vector_store %arg5[%c0_6, %c0_7, %c0_8], %9 {strides = array<i32>} : memref<1x10x256xf32, #tpu.memory_space<vmem>>, vector<1x10x256xf32>,
    return
  }
  func.func @transform_0(%arg0: i32, %arg1: i32) -> (i32, i32, i32) {
    %c0_i32 = arith.constant 0 : i32
    %c0_i32_0 = arith.constant 0 : i32
    return %arg0, %c0_i32, %arg1 : i32, i32, i32
  }
  func.func @transform_1(%arg0: i32, %arg1: i32) -> (i32, i32) {
    %c0_i32 = arith.constant 0 : i32
    %c0_i32_0 = arith.constant 0 : i32
    %c0_i32_1 = arith.constant 0 : i32
    return %c0_i32, %c0_i32_0 : i32, i32
  }
  func.func @transform_2(%arg0: i32, %arg1: i32) -> (i32, i32) {
    %c0_i32 = arith.constant 0 : i32
    %c0_i32_0 = arith.constant 0 : i32
    %c0_i32_1 = arith.constant 0 : i32
    return %c0_i32, %c0_i32_0 : i32, i32
  }
  func.func @transform_3(%arg0: i32, %arg1: i32) -> (i32, i32, i32) {
    %c0_i32 = arith.constant 0 : i32
    %c0_i32_0 = arith.constant 0 : i32
    return %arg0, %c0_i32, %arg1 : i32, i32, i32
  }
}

</mosaic_0001>

<llo_original>
// kernel: tpu_custom_call.1
$region0: #{tpu_custom_call.1}
  #allocation0 [shape = 'u32[]', space=smem, size = 0x4, offset = 0x4, fixed_abs, tag = 'smem constant byte address 0x4 - core index']
  #allocation1 [shape = 'u32[144,128]{1,0:T(1,128)}', space=vmem, size = 0x12000, scoped, tag = 'internal scratch']
  %s0 = inlined_call_operand.vmem [shape: f32[2,1,256], index: 0, kind: input, shape index: {}]
  %s1 = inlined_call_operand.vmem [shape: f32[10,1], index: 1, kind: input, shape index: {}]
  %s2 = inlined_call_operand.vmem [shape: f32[10,1], index: 2, kind: input, shape index: {}]
  %s3 = inlined_call_operand.vmem [shape: f32[2,10,256], index: 3, kind: output, shape index: {}]
  %s4 = sld [smem:[#allocation0]]
  $region45: #{tpu_custom_call.1} parent=0
    _
  %s6 = ssub.s32 1, %s4
  %s7 = scalar_select 0, %s6, %s4
  loop: start=0, step=1, limit=4
  $region2: #{tpu_custom_call.1} parent=0 // loop_pre_header
    _
  $region3: #{tpu_custom_call.1} parent=0 // loop_header
    %s9 = sphi 0, %s13
    %p10 = scmp.ge.s32.totalorder %s9, 4
    %s16 = sphi 0, %s28
    %s17 = sphi 0, %s24
    %s18 = sphi 0, %s16
    %s19 = sphi 0, %s17
    %s20 = sphi 0, %s18
    %s21 = sphi 0, %s19
    %s33 = sphi 0, %s35
    %s36 = sphi 0, %s33
    %s37 = sphi 0, %s36
    %s53 = sphi 0, %s37
    %s57 = sphi 0, %s57
    %s59 = sphi 0, %s57
    %s60 = sphi 0, %s59
    %s74 = sphi 0, %s60
    %s78 = sphi 0, %s78
    %s80 = sphi 0, %s78
    %s81 = sphi 0, %s80
    %s95 = sphi 0, %s81
    %s103 = sphi 0, %s105
    %s106 = sphi 0, %s103
    %s107 = sphi 0, %s106
    %s123 = sphi 0, %s107
  $region4: #{tpu_custom_call.1} parent=0 // loop_header_branch
    %12 = sbr.rel (%p10) target = $region8
  $region5: #{tpu_custom_call.1} parent=0 // loop_body
    %s14 = ssub.s32 %s9, 1
    %s15 = ssub.s32 %s9, 2
    %s22 = sadd.s32 1, %s17
    %p23 = scmp.ge.s32.totalorder %s22, 1
    %s24 = scalar_select %p23, 0, %s22
    %s25 = sadd.s32 1, %s16
    %s26 = scalar_select %p23, %s25, %s16
    %p27 = scmp.ge.s32.totalorder %s26, 2
    %s28 = scalar_select %p27, 0, %s26
    %s29 = ssub.s32 %s16, %s28
    %s30 = ssub.s32 %s17, %s24
    %s31 = sor.u32 %s29, %s30
    %p32 = scmp.eq.s32.totalorder %s31, 0
    %s34 = sadd.s32 %s33, 1
    %s35 = scalar_select %p32, %s33, %s34
    %p38 = pneg %p32
    %p39 = scmp.eq.s32.totalorder %s9, 1
    %p40 = por %p38, %p39
    %p41 = scmp.ne.s32.totalorder %s33, %s36
    %p42 = scmp.eq.s32.totalorder %s9, 0
    %p43 = por %p41, %p42
    %p44 = scmp.ne.s32.totalorder %s33, %s36
    %p45 = scmp.eq.s32.totalorder %s14, 1
    %p46 = por %p44, %p45
    %p47 = scmp.ne.s32.totalorder %s36, %s37
    %p48 = scmp.eq.s32.totalorder %s14, 0
    %p49 = por %p47, %p48
    %p50 = scmp.ne.s32.totalorder %s36, %s37
    %p51 = scmp.eq.s32.totalorder %s15, 1
    %p52 = por %p50, %p51
    %p54 = scmp.ne.s32.totalorder %s37, %s53
    %p55 = scmp.eq.s32.totalorder %s15, 0
    %p56 = por %p54, %p55
    %s58 = sadd.s32 %s57, 1
    %p61 = scmp.eq.s32.totalorder %s9, 1
    %p62 = scmp.ne.s32.totalorder %s57, %s59
    %p63 = scmp.eq.s32.totalorder %s9, 0
    %p64 = por %p62, %p63
    %p65 = scmp.ne.s32.totalorder %s57, %s59
    %p66 = scmp.eq.s32.totalorder %s14, 1
    %p67 = por %p65, %p66
    %p68 = scmp.ne.s32.totalorder %s59, %s60
    %p69 = scmp.eq.s32.totalorder %s14, 0
    %p70 = por %p68, %p69
    %p71 = scmp.ne.s32.totalorder %s59, %s60
    %p72 = scmp.eq.s32.totalorder %s15, 1
    %p73 = por %p71, %p72
    %p75 = scmp.ne.s32.totalorder %s60, %s74
    %p76 = scmp.eq.s32.totalorder %s15, 0
    %p77 = por %p75, %p76
    %s79 = sadd.s32 %s78, 1
    %p82 = scmp.eq.s32.totalorder %s9, 1
    %p83 = scmp.ne.s32.totalorder %s78, %s80
    %p84 = scmp.eq.s32.totalorder %s9, 0
    %p85 = por %p83, %p84
    %p86 = scmp.ne.s32.totalorder %s78, %s80
    %p87 = scmp.eq.s32.totalorder %s14, 1
    %p88 = por %p86, %p87
    %p89 = scmp.ne.s32.totalorder %s80, %s81
    %p90 = scmp.eq.s32.totalorder %s14, 0
    %p91 = por %p89, %p90
    %p92 = scmp.ne.s32.totalorder %s80, %s81
    %p93 = scmp.eq.s32.totalorder %s15, 1
    %p94 = por %p92, %p93
    %p96 = scmp.ne.s32.totalorder %s81, %s95
    %p97 = scmp.eq.s32.totalorder %s15, 0
    %p98 = por %p96, %p97
    %s99 = ssub.s32 %s16, %s28
    %s100 = ssub.s32 %s17, %s24
    %s101 = sor.u32 %s99, %s100
    %p102 = scmp.eq.s32.totalorder %s101, 0
    %s104 = sadd.s32 %s103, 1
    %s105 = scalar_select %p102, %s103, %s104
    %p108 = pneg %p102
    %p109 = scmp.eq.s32.totalorder %s9, 1
    %p110 = por %p108, %p109
    %p111 = scmp.ne.s32.totalorder %s103, %s106
    %p112 = scmp.eq.s32.totalorder %s9, 0
    %p113 = por %p111, %p112
    %p114 = scmp.ne.s32.totalorder %s103, %s106
    %p115 = scmp.eq.s32.totalorder %s14, 1
    %p116 = por %p114, %p115
    %p117 = scmp.ne.s32.totalorder %s106, %s107
    %p118 = scmp.eq.s32.totalorder %s14, 0
    %p119 = por %p117, %p118
    %p120 = scmp.ne.s32.totalorder %s106, %s107
    %p121 = scmp.eq.s32.totalorder %s15, 1
    %p122 = por %p120, %p121
    %p124 = scmp.ne.s32.totalorder %s107, %s123
    %p125 = scmp.eq.s32.totalorder %s15, 0
    %p126 = por %p124, %p125
    %p127 = scmp.le.s32.totalorder 1, %s9
    %p128 = scmp.lt.s32.totalorder %s9, 3
    %p129 = pnand %p127, %p128
    %p130 = pneg %p129
    // Predicated region
    $region9: #{tpu_custom_call.1} parent=5 // pred_check
      _
    $region10: #{tpu_custom_call.1} parent=5 // pred_check_branch
      %132 = sbr.rel (%p129) target = $region12
    $region11: #{tpu_custom_call.1} parent=5 // pred_region
      %s133 = ssub.s32 %s9, 1
      // Predicated region
      $region13: #{tpu_custom_call.1} parent=11 // pred_check
        %p134 = pneg %p70
      $region14: #{tpu_custom_call.1} parent=11 // pred_check_branch
        %136 = sbr.rel (%p134) target = $region16
      $region15: #{tpu_custom_call.1} parent=11 // pred_region
        _
      $region16: #{tpu_custom_call.1} parent=11 // pred_fallthru
        _
      // Predicated region
      $region17: #{tpu_custom_call.1} parent=11 // pred_check
        %p137 = pneg %p91
      $region18: #{tpu_custom_call.1} parent=11 // pred_check_branch
        %139 = sbr.rel (%p137) target = $region20
      $region19: #{tpu_custom_call.1} parent=11 // pred_region
        _
      $region20: #{tpu_custom_call.1} parent=11 // pred_fallthru
        _
    $region12: #{tpu_custom_call.1} parent=5 // pred_fallthru
      _
    %p140 = scmp.lt.s32.totalorder %s9, 2
    // Predicated region
    $region21: #{tpu_custom_call.1} parent=5 // pred_check
      %p141 = pneg %p140
    $region22: #{tpu_custom_call.1} parent=5 // pred_check_branch
      %143 = sbr.rel (%p141) target = $region24
    $region23: #{tpu_custom_call.1} parent=5 // pred_region
      // Predicated region
      $region25: #{tpu_custom_call.1} parent=23 // pred_check
        %p144 = pneg %p43
      $region26: #{tpu_custom_call.1} parent=23 // pred_check_branch
        %146 = sbr.rel (%p144) target = $region28
      $region27: #{tpu_custom_call.1} parent=23 // pred_region
        %s147 = smul.u32 2, %s17
        %p148 = scmp.lt.s32.totalorder %s16, 1
        %s149 = scalar_select %p148, %s16, 1
        %p150 = scmp.lt.s32.totalorder %s147, 1
        %s151 = scalar_select %p150, %s147, 1
        %s152 = smul.addr %s149, 2
        %s153 = sadd.s32 %s151, %s152
        %s154 = scalar_lea.vmem %s0, %s153
        %s155 = smul.u32 2, %s17
      $region28: #{tpu_custom_call.1} parent=23 // pred_fallthru
        _
    $region24: #{tpu_custom_call.1} parent=5 // pred_fallthru
      _
    %p156 = scmp.le.s32.totalorder 1, %s9
    %p157 = scmp.lt.s32.totalorder %s9, 3
    %p158 = pnand %p156, %p157
    %p159 = pneg %p158
    // Predicated region
    $region29: #{tpu_custom_call.1} parent=5 // pred_check
      _
    $region30: #{tpu_custom_call.1} parent=5 // pred_check_branch
      %161 = sbr.rel (%p158) target = $region32
    $region31: #{tpu_custom_call.1} parent=5 // pred_region
      %s162 = ssub.s32 %s9, 1
      %s163 = smul.u32 2, %s19
      %p164 = scmp.lt.s32.totalorder %s18, 1
      %s165 = scalar_select %p164, %s18, 1
      %p166 = scmp.lt.s32.totalorder %s163, 1
      %s167 = scalar_select %p166, %s163, 1
      %s168 = smul.addr %s165, 2
      %s169 = sadd.s32 %s167, %s168
      %s170 = scalar_lea.vmem %s0, %s169
      %p171 = pneg %p49
      %p172 = pneg %p46
      %p173 = pneg %p70
      %p174 = pneg %p67
      %p175 = pneg %p91
      %p176 = pneg %p88
      %p177 = pneg %p119
      %p178 = pneg %p116
      %s179 = smul.u32 2, %s19
      %p180 = scmp.lt.s32.totalorder %s18, 1
      %s181 = scalar_select %p180, %s18, 1
      %p182 = scmp.lt.s32.totalorder %s179, 1
      %s183 = scalar_select %p182, %s179, 1
      %s184 = smul.addr %s181, 4
      %s185 = sadd.s32 %s183, %s184
      %s186 = smul.addr %s185, 8
      %s187 = scalar_lea.vmem %s3, %s186
      %s188 = smul.u32 2, %s19
      %p189 = scmp.lt.s32.totalorder %s18, 1
      %s190 = scalar_select %p189, %s18, 1
      %p191 = scmp.lt.s32.totalorder %s188, 1
      %s192 = scalar_select %p191, %s188, 1
      %s193 = smul.addr %s190, 2
      %s194 = sadd.s32 %s192, %s193
      %s195 = scalar_lea.vmem %s0, %s194
      %s196 = smul.u32 2, %s19
      %s197 = smul.u32 2, %s19
      %p198 = scmp.lt.s32.totalorder %s18, 1
      %s199 = scalar_select %p198, %s18, 1
      %p200 = scmp.lt.s32.totalorder %s197, 1
      %s201 = scalar_select %p200, %s197, 1
      %s202 = smul.addr %s199, 4
      %s203 = sadd.s32 %s201, %s202
      %s204 = smul.addr %s203, 8
      %s205 = scalar_lea.vmem %s3, %s204
      %s206 = smul.u32 2, %s19
      %v207 = vld [vmem:[%s1] sm:$0xff]
      %v208 = vld [vmem:[%s1 + $0x8] sm:$0x3]
      %v209 = vld [vmem:[%s2] sm:$0xff]
      %v210 = vld [vmem:[%s2 + $0x8] sm:$0x3]
      %v211 = vld [vmem:[%s195] sm:$0x3]
      %213 = vset.pattern.permute.xlu0 0
      %214 = vperm.xlu0 %213, %v207
      %v215 = vpop.permute.xlu0 %214
      %218 = vset.pattern.permute.xlu0 0
      %219 = vperm.xlu0 %218, %v208
      %v220 = vpop.permute.xlu0 %219
      %v223 = vlaneseq
      %v224 = vshrl.u32 %v223, 7
      %v225 = vsub.s32 0, %v224
      %v226 = vrot.slane %v211, %v225
      %v227 = vlaneseq
      %v228 = vshrl.u32 %v227, 7
      %v229 = vsub.s32 1, %v228
      %v230 = vrot.slane %v211, %v229
      %v233 = vmul.f32 %v215, %v226
      %v234 = vmul.f32 %v215, %v230
      %v235 = vmul.f32 %v220, %v226
      %v236 = vmul.f32 %v220, %v230
      %238 = vset.pattern.permute.xlu0 0
      %239 = vperm.xlu0 %238, %v209
      %v240 = vpop.permute.xlu0 %239
      %243 = vset.pattern.permute.xlu0 0
      %244 = vperm.xlu0 %243, %v210
      %v245 = vpop.permute.xlu0 %244
      %v247 = vadd.f32 %v233, %v240
      %v248 = vadd.f32 %v234, %v240
      %v249 = vadd.f32 %v235, %v245
      %v250 = vadd.f32 %v236, %v245
      %251 = vst [vmem:[%s205] sm:$0xff] %v247
      %252 = vst [vmem:[%s205 + $0x8] sm:$0xff] %v248
      %253 = vst [vmem:[%s205 + $0x10] sm:$0x3] %v249
      %254 = vst [vmem:[%s205 + $0x18] sm:$0x3] %v250
      %s255 = smul.u32 2, %s19
      %p256 = scmp.lt.s32.totalorder %s18, 1
      %s257 = scalar_select %p256, %s18, 1
      %p258 = scmp.lt.s32.totalorder %s255, 1
      %s259 = scalar_select %p258, %s255, 1
      %s260 = smul.addr %s257, 4
      %s261 = sadd.s32 %s259, %s260
      %s262 = smul.addr %s261, 8
      %s263 = scalar_lea.vmem %s3, %s262
      // Predicated region
      $region33: #{tpu_custom_call.1} parent=31 // pred_check
        %p264 = pneg %p116
      $region34: #{tpu_custom_call.1} parent=31 // pred_check_branch
        %266 = sbr.rel (%p264) target = $region36
      $region35: #{tpu_custom_call.1} parent=31 // pred_region
        %s267 = smul.u32 2, %s19
      $region36: #{tpu_custom_call.1} parent=31 // pred_fallthru
        _
    $region32: #{tpu_custom_call.1} parent=5 // pred_fallthru
      _
    %p268 = scmp.le.s32.totalorder 2, %s9
    // Predicated region
    $region37: #{tpu_custom_call.1} parent=5 // pred_check
      %p269 = pneg %p268
    $region38: #{tpu_custom_call.1} parent=5 // pred_check_branch
      %271 = sbr.rel (%p269) target = $region40
    $region39: #{tpu_custom_call.1} parent=5 // pred_region
      %s272 = ssub.s32 %s9, 2
      // Predicated region
      $region41: #{tpu_custom_call.1} parent=39 // pred_check
        %p273 = pneg %p122
      $region42: #{tpu_custom_call.1} parent=39 // pred_check_branch
        %275 = sbr.rel (%p273) target = $region44
      $region43: #{tpu_custom_call.1} parent=39 // pred_region
        %s276 = smul.u32 2, %s21
        %p277 = scmp.lt.s32.totalorder %s20, 1
        %s278 = scalar_select %p277, %s20, 1
        %p279 = scmp.lt.s32.totalorder %s276, 1
        %s280 = scalar_select %p279, %s276, 1
        %s281 = smul.addr %s278, 4
        %s282 = sadd.s32 %s280, %s281
        %s283 = smul.addr %s282, 8
        %s284 = scalar_lea.vmem %s3, %s283
      $region44: #{tpu_custom_call.1} parent=39 // pred_fallthru
        _
    $region40: #{tpu_custom_call.1} parent=5 // pred_fallthru
      _
  $region6: #{tpu_custom_call.1} parent=0 // loop_footer
    %s13 = sadd.s32 1, %s9
  $region7: #{tpu_custom_call.1} parent=0 // loop_footer_branch
    %8 = sbr.rel target = $region3
  $region8: #{tpu_custom_call.1} parent=0 // loop_exit
    _

</llo_original>
